<compile_context>
chip_gen: v7x
topology: tpu7x:2x2x1
jax: 0.10.0
libtpu: 0.0.40
codegen_flags: <defaults>
</compile_context>

<pallas_src>
import functools
import math

import jax
import jax.numpy as jnp
from jax.experimental import pallas as pl
from jax.experimental.pallas import tpu as pltpu

CHANNELS = 64
NUM_INNER_CONVS = 12
DILATIONS = [1] + [2 ** (i // 3) for i in range(1, NUM_INNER_CONVS + 1)] + [1]
NUM_CONV_LAYERS = len(DILATIONS)  # 14 ConvLayer blocks
EPS = 1e-5
NEG_SLOPE = 0.2
REF_PREC = jax.lax.Precision.HIGHEST  # reference (XLA) path only


# ---------------------------------------------------------------------------
# pltpu.roll sign-convention probe (tiny one-off kernel, cached).  Makes the
# kernel robust to either rotate direction convention.
# ---------------------------------------------------------------------------
_ROLL_LIKE_JNP = None


def _roll_probe_kernel(x_ref, o_ref):
    o_ref[...] = pltpu.roll(x_ref[...], shift=1, axis=1)


def _roll_convention_is_jnp_like():
    """True iff pltpu.roll(x, s, axis)[..., i] == x[..., i - s] (jnp.roll)."""
    global _ROLL_LIKE_JNP
    if _ROLL_LIKE_JNP is None:
        x = jnp.tile(jnp.arange(128, dtype=jnp.float32)[None, :], (8, 1))
        vmem = pl.BlockSpec(memory_space=pltpu.MemorySpace.VMEM)
        y = pl.pallas_call(
            _roll_probe_kernel,
            out_shape=jax.ShapeDtypeStruct((8, 128), jnp.float32),
            in_specs=[vmem],
            out_specs=vmem,
        )(x)
        first = float(y[0, 0])
        if first == 127.0:
            _ROLL_LIKE_JNP = True
        elif first == 1.0:
            _ROLL_LIKE_JNP = False
        else:
            raise RuntimeError(f"unexpected pltpu.roll convention (probe={first})")
    return _ROLL_LIKE_JNP


def _bf16_elementwise_ok():
    """bf16 VPU elementwise is native on v6e / v7x; v5e (and older / unknown
    backends) get the f32 roll+mask fallback and cast to bf16 only at the MXU
    boundary.  Both paths are numerically identical."""
    try:
        kind = jax.devices()[0].device_kind.lower()
    except Exception:  # pragma: no cover - defensive
        return False
    return any(tag in kind for tag in ("v6", "v7", "7x"))


# ---------------------------------------------------------------------------
# Fused forward kernel
# ---------------------------------------------------------------------------
def speech_denoise_kernel(x_ref, w0_ref, w2_ref, whi_ref, gamma_ref, beta_ref,
                          wout_ref, a_ref, b_ref, bias_ref, o_ref,
                          *, length, roll_like_jnp, bf16_elementwise):
    bl = o_ref.shape[1]                     # B * L (batch concatenated on lanes)
    inv_n = 1.0 / float(bl)

    # Position of each column inside its utterance.  Masking at t < d and
    # t >= L - d implements the conv's zero padding AND prevents tap leakage
    # across the batch seam (hoisted once; reused for all dilations).
    tpos = jax.lax.broadcasted_iota(jnp.int32, (1, bl), 1) % length
    mask_cache = {}

    def get_masks(d, dtype):
        key = (d, jnp.dtype(dtype).name)
        if key not in mask_cache:
            m_prev = (tpos >= d).astype(jnp.float32).astype(dtype)          # x[t-d] valid
            m_next = (tpos < length - d).astype(jnp.float32).astype(dtype)  # x[t+d] valid
            mask_cache[key] = (m_prev, m_next)
        return mask_cache[key]

    def shifted(x, d):
        """Return (x[t-d], x[t+d]), zero padded per utterance, via XLU rolls."""
        n = x.shape[-1]
        fwd = d % n if roll_like_jnp else (n - d) % n   # data -> higher indices
        bwd = (n - d) % n if roll_like_jnp else d % n   # data -> lower indices
        m_prev, m_next = get_masks(d, x.dtype)
        x_prev = pltpu.roll(x, shift=fwd, axis=1) * m_prev
        x_next = pltpu.roll(x, shift=bwd, axis=1) * m_next
        return x_prev, x_next

    def split_bf16(x):
        """Exact-ish hi/lo bf16 decomposition of an f32 slab (64 rows, once/layer)."""
        hi = x.astype(jnp.bfloat16)
        lo = (x - hi.astype(jnp.float32)).astype(jnp.bfloat16)
        return hi, lo

    def abn_lrelu(conv, l):
        """a*conv + b*BatchNorm(conv), folded into one affine, then LeakyReLU."""
        # Single fused cross-lane reduction for sum(x) and sum(x^2):
        # stack [conv; conv*conv] along sublanes -> one XLU reduce per layer.
        stat = jnp.sum(jnp.concatenate([conv, conv * conv], axis=0),
                       axis=1, keepdims=True)                         # (2C, 1)
        mean = stat[0:CHANNELS] * inv_n                               # (C, 1)
        ex2 = stat[CHANNELS:2 * CHANNELS] * inv_n                     # (C, 1)
        inv_std = jax.lax.rsqrt(ex2 - mean * mean + EPS)              # (C, 1)  EUP
        g_inv = gamma_ref[l] * inv_std                                # (C, 1)
        a = a_ref[l]                                                  # SMEM scalar
        b = b_ref[l]                                                  # SMEM scalar
        scale = a + b * g_inv                                         # (C, 1)
        shift = b * (beta_ref[l] - g_inv * mean)                      # (C, 1)
        y = conv * scale + shift
        return jnp.maximum(y, NEG_SLOPE * y)                          # LeakyReLU(0.2)

    # ---- layer 0: single input channel -> 3 VPU broadcast mul-adds ---------
    x8 = x_ref[...]                          # (8, B*L) f32, row 0 holds the audio
    xp8, xn8 = shifted(x8, DILATIONS[0])
    w0 = w0_ref[...]                         # (64, 3) taps for the 1 real channel
    conv = (w0[:, 0:1] * xp8[0:1, :]
            + w0[:, 1:2] * x8[0:1, :]
            + w0[:, 2:3] * xn8[0:1, :])      # (64, B*L) f32
    y = abn_lrelu(conv, 0)                   # f32 activation
    h_hi, h_lo = split_bf16(y)               # split ONCE per layer (64 rows)

    # ---- layers 1..13: 2 MXU dots per layer (M-stacked hi/lo weights) ------
    for l in range(1, NUM_CONV_LAYERS):
        d = DILATIONS[l]
        if bf16_elementwise:
            # v6e/v7x: roll + mask the bf16 hi/lo slabs directly (no extra split).
            xp_hi, xn_hi = shifted(h_hi, d)
            xp_lo, xn_lo = shifted(h_lo, d)
        else:
            # v5e (no bf16 VALU): roll + mask in f32, split only the rolled slabs.
            xp, xn = shifted(y, d)
            xp_hi, xp_lo = split_bf16(xp)
            xn_hi, xn_lo = split_bf16(xn)

        # Tap concat in bf16 only: rows ordered [x[t-d]; x[t]; x[t+d]].
        xcat_hi = jnp.concatenate([xp_hi, h_hi, xn_hi], axis=0)       # (192, N) bf16
        xcat_lo = jnp.concatenate([xp_lo, h_lo, xn_lo], axis=0)       # (192, N) bf16

        # (W_hi + W_lo) @ X_hi + W_hi @ X_lo  (W_lo @ X_lo term negligible):
        # one 128-tall dot + one 64-tall correction dot, fp32 accumulation.
        big = jnp.dot(w2_ref[l - 1], xcat_hi,
                      preferred_element_type=jnp.float32)             # (128, N)
        corr = jnp.dot(whi_ref[l - 1], xcat_lo,
                       preferred_element_type=jnp.float32)            # (64, N)
        conv = big[0:CHANNELS] + big[CHANNELS:2 * CHANNELS] + corr    # (64, N)

        y = abn_lrelu(conv, l)
        h_hi, h_lo = split_bf16(y)

    # ---- output 1x1 conv (+bias) on VPU/XLU, then tanh ----------------------
    pre = jnp.sum(y * wout_ref[...], axis=0, keepdims=True) + bias_ref[0]  # (1, N)
    o_ref[...] = jnp.tanh(pre)


# ---------------------------------------------------------------------------
# Wrapper: jit-fused slab build + pallas_call + reshape
# ---------------------------------------------------------------------------
@functools.partial(jax.jit, static_argnames=("roll_like_jnp", "bf16_elementwise"))
def _forward_jit(x, params, *, roll_like_jnp, bf16_elementwise):
    B, one, L = x.shape
    assert one == 1
    bl = B * L

    # Single input channel packed into sublane 0 of an 8-row, lane-dense slab.
    x_slab = jnp.zeros((8, bl), jnp.float32).at[0, :].set(x.reshape(bl))

    kernel = functools.partial(speech_denoise_kernel, length=L,
                               roll_like_jnp=roll_like_jnp,
                               bf16_elementwise=bf16_elementwise)

    vmem = pl.BlockSpec(memory_space=pltpu.MemorySpace.VMEM)
    smem = pl.BlockSpec(memory_space=pltpu.MemorySpace.SMEM)

    operands = (x_slab, params["w0"], params["w2"], params["w_hi"],
                params["gamma"], params["beta"], params["wout"],
                params["a"], params["b"], params["bias"])

    # Advisory cost estimate for XLA's scheduler.
    mm_flops = (NUM_CONV_LAYERS - 1) * 2 * (3 * CHANNELS) * (3 * CHANNELS) * bl
    l0_flops = 2 * CHANNELS * 3 * bl
    ew_flops = NUM_CONV_LAYERS * CHANNELS * bl * 10
    cost = pl.CostEstimate(
        flops=int(mm_flops + l0_flops + ew_flops),
        transcendentals=int(NUM_CONV_LAYERS * CHANNELS + bl),
        bytes_accessed=int(sum(op.size * op.dtype.itemsize for op in operands)
                           + bl * 4),
    )

    out = pl.pallas_call(
        kernel,
        out_shape=jax.ShapeDtypeStruct((1, bl), jnp.float32),
        in_specs=[vmem] * 7 + [smem] * 3,
        out_specs=vmem,
        cost_estimate=cost,
    )(*operands)
    return out.reshape(B, L)


def speech_denoise_forward(x, params):
    """x: (B, 1, L) float32  ->  (B, L) float32."""
    roll_like_jnp = _roll_convention_is_jnp_like()
    bf16_elementwise = _bf16_elementwise_ok()
    return _forward_jit(x, params, roll_like_jnp=roll_like_jnp,
                        bf16_elementwise=bf16_elementwise)


# ---------------------------------------------------------------------------
# Parameter construction (matches the PyTorch module's init scheme)
# ---------------------------------------------------------------------------
def init_params(key):
    keys = jax.random.split(key, NUM_CONV_LAYERS + 4)

    conv_w = []                      # torch layout (C_out, C_in, 3)
    for l in range(NUM_CONV_LAYERS):
        cin = 1 if l == 0 else CHANNELS
        fan_in, fan_out = cin * 3, CHANNELS * 3
        bound = math.sqrt(6.0 / (fan_in + fan_out))          # xavier_uniform_
        w = jax.random.uniform(keys[l], (CHANNELS, cin, 3), jnp.float32,
                               -bound, bound)
        conv_w.append(w)

    # Layer 0 (in_channels=1): kept f32, used on the VPU -> (64, 3).
    w0 = conv_w[0][:, 0, :]

    # Layers 1..13: concat taps along K -> (64, 192); Xcat rows are ordered
    # [x[t-d]; x[t]; x[t+d]], matching tap order k=0,1,2.  bf16 hi/lo split,
    # then M-stack hi over lo -> (13, 128, 192) for the single big dot.
    wcat = jnp.stack(
        [jnp.concatenate([conv_w[l][:, :, 0], conv_w[l][:, :, 1],
                          conv_w[l][:, :, 2]], axis=1)
         for l in range(1, NUM_CONV_LAYERS)], axis=0)        # (13, 64, 192) f32
    w_hi = wcat.astype(jnp.bfloat16)
    w_lo = (wcat - w_hi.astype(jnp.float32)).astype(jnp.bfloat16)
    w2 = jnp.concatenate([w_hi, w_lo], axis=1)               # (13, 128, 192) bf16

    # Adaptive batch-norm scalar mixing params (deterministic, non-trivial so
    # the BN path is exercised) and BatchNorm affine params (gamma=1, beta=0).
    a_vals = 1.0 + 0.1 * jax.random.uniform(keys[NUM_CONV_LAYERS],
                                            (NUM_CONV_LAYERS,), jnp.float32)
    b_vals = 0.05 + 0.1 * jax.random.uniform(keys[NUM_CONV_LAYERS + 1],
                                             (NUM_CONV_LAYERS,), jnp.float32)
    gamma = jnp.ones((NUM_CONV_LAYERS, CHANNELS, 1), jnp.float32)
    beta = jnp.zeros((NUM_CONV_LAYERS, CHANNELS, 1), jnp.float32)

    # Output 1x1 conv (PyTorch default-ish uniform init) + bias.
    ob = 1.0 / math.sqrt(CHANNELS)
    wout = jax.random.uniform(keys[NUM_CONV_LAYERS + 2], (1, CHANNELS),
                              jnp.float32, -ob, ob)
    bias = jax.random.uniform(keys[NUM_CONV_LAYERS + 3], (1,),
                              jnp.float32, -ob, ob)

    params = dict(
        w0=w0,
        w2=w2,                             # (13, 128, 192) bf16  [W_hi; W_lo]
        w_hi=w_hi,                         # (13, 64, 192)  bf16
        gamma=gamma,
        beta=beta,
        wout=jnp.transpose(wout),          # (64, 1) for the VPU epilogue
        a=a_vals,                          # (14,)  f32  -> SMEM
        b=b_vals,                          # (14,)  f32  -> SMEM
        bias=bias,                         # (1,)   f32  -> SMEM
    )
    ref_params = dict(conv_w=conv_w, gamma=gamma, beta=beta, a=a_vals,
                      b=b_vals, wout=wout, bias=bias)
    return params, ref_params


# ---------------------------------------------------------------------------
# Pure-JAX/XLA reference (independent of the Pallas kernel), fp32 HIGHEST
# ---------------------------------------------------------------------------
def reference_forward(x, ref_params):
    h = x
    for l in range(NUM_CONV_LAYERS):
        d = DILATIONS[l]
        conv = jax.lax.conv_general_dilated(
            h, ref_params["conv_w"][l], window_strides=(1,), padding=[(d, d)],
            rhs_dilation=(d,), dimension_numbers=("NCH", "OIH", "NCH"),
            precision=REF_PREC)
        mean = jnp.mean(conv, axis=(0, 2), keepdims=True)
        var = jnp.mean((conv - mean) ** 2, axis=(0, 2), keepdims=True)
        g = ref_params["gamma"][l][None]   # (1, C, 1)
        bt = ref_params["beta"][l][None]
        bn = (conv - mean) / jnp.sqrt(var + EPS) * g + bt
        y = ref_params["a"][l] * conv + ref_params["b"][l] * bn
        h = jnp.where(y >= 0, y, NEG_SLOPE * y)
    wout = ref_params["wout"].reshape(1, CHANNELS, 1)
    out = jax.lax.conv_general_dilated(
        h, wout, window_strides=(1,), padding=[(0, 0)],
        dimension_numbers=("NCH", "OIH", "NCH"), precision=REF_PREC)
    out = out[:, 0, :] + ref_params["bias"][0]
    return jnp.tanh(out)


if __name__ == "__main__":
    B, L = 2, 256
    key = jax.random.PRNGKey(0)
    k_x, k_p = jax.random.split(key)
    x = jax.random.normal(k_x, (B, 1, L), jnp.float32)

    params, ref_params = init_params(k_p)

    y_kernel = jax.block_until_ready(speech_denoise_forward(x, params))
    assert y_kernel.shape == (B, L)
    assert y_kernel.dtype == jnp.float32

    y_ref = jax.block_until_ready(reference_forward(x, ref_params))
    max_err = float(jnp.max(jnp.abs(y_kernel - y_ref)))
    assert max_err < 5e-3, f"mismatch vs reference: max abs err = {max_err}"

    print("KERNEL_OK")
</pallas_src>

<mosaic_0001>
module attributes {stable_mosaic.version = 11 : i64} {
  func.func @_roll_probe_kernel(%arg0: memref<8x128xf32, #tpu.memory_space<vmem>>, %arg1: memref<8x128xf32, #tpu.memory_space<vmem>>) attributes {dimension_semantics = [], scalar_prefetch = 0 : i64, scratch_operands = 0 : i64, tpu.core_type = #tpu.core_type<tc>} {
    %c0 = arith.constant 0 : index
    %c0_0 = arith.constant 0 : index
    %0 = vector.load %arg0[%c0, %c0_0] : memref<8x128xf32, #tpu.memory_space<vmem>>, vector<8x128xf32>
    %c1_i32 = arith.constant 1 : i32
    %1 = tpu.dynamic_rotate %0 by %c1_i32 dim 1 : vector<8x128xf32>, i32 -> vector<8x128xf32>
    %c0_1 = arith.constant 0 : index
    %c0_2 = arith.constant 0 : index
    %2 = vector.load %arg1[%c0_1, %c0_2] : memref<8x128xf32, #tpu.memory_space<vmem>>, vector<8x128xf32>
    tpu.vector_store %arg1[%c0_1, %c0_2], %1 {strides = array<i32>} : memref<8x128xf32, #tpu.memory_space<vmem>>, vector<8x128xf32>,
    return
  }
}

</mosaic_0001>

<llo_original>
// kernel: tpu_custom_call.1
$region0: #{tpu_custom_call.1}
  #allocation0 [shape = 'u32[]', space=smem, size = 0x4, offset = 0x4, fixed_abs, tag = 'smem constant byte address 0x4 - core index']
  #allocation1 [shape = 'u32[144,128]{1,0:T(1,128)}', space=vmem, size = 0x12000, scoped, tag = 'internal scratch']
  %s0 = inlined_call_operand.hbm [shape: f32[8,128], index: 0, kind: input, shape index: {}]
  %s1 = inlined_call_operand.hbm [shape: f32[8,128], index: 1, kind: output, shape index: {}]
  %s2 = sld [smem:[#allocation0]]
  $region18: #{tpu_custom_call.1} parent=0
    _
  %s4 = ssub.s32 1, %s2
  %s5 = scalar_select 0, %s4, %s2
  $region1: #{tpu_custom_call.1} parent=0
    #allocation2 [shape = 'u8[4096]{0}', space=vmem, size = 0x1000, scoped, tag = 'input window, operand 0, single buffered']
    #allocation3 [shape = 's32[1]{0}', space=sflag, size = 0x4, scoped, tag = 'scoped memory for tpu_custom_call.1']
    #allocation4 [shape = 's32[1]{0}', space=sflag, size = 0x4, scoped, tag = 'scoped memory for tpu_custom_call.1']
    #allocation5 [shape = 'u8[4096]{0}', space=vmem, size = 0x1000, scoped, tag = 'output window, operand 0, single buffered']
    %6 = vsyncpa [#allocation3], 0
    %7 = vsyncpa [#allocation4], 0
    // Predicated region
    $region2: #{tpu_custom_call.1} parent=1 // pred_check
      _
    $region3: #{tpu_custom_call.1} parent=1 // pred_check_branch
      %9 = sbr.rel (0) target = $region5
    $region4: #{tpu_custom_call.1} parent=1 // pred_region
      %s11 = ssub.s32 128, 128
      %12 = vsyncadd [#allocation3], %s11
      %s14 = sshll.u32 [#allocation2], 4
      %s15 = int_to_ptr.vmem [resolvable:$true] %s14
      %17 = dma.hbm_to_vmem [thread:$0]  %s0, 128, %s15, [#allocation3]
    $region5: #{tpu_custom_call.1} parent=1 // pred_fallthru
      _
    // Predicated region
    $region6: #{tpu_custom_call.1} parent=1 // pred_check
      _
    $region7: #{tpu_custom_call.1} parent=1 // pred_check_branch
      %19 = sbr.rel (0) target = $region9
    $region8: #{tpu_custom_call.1} parent=1 // pred_region
      %20 = dma.done [#allocation3], 128
    $region9: #{tpu_custom_call.1} parent=1 // pred_fallthru
      _
    %v21 = vld [vmem:[#allocation2] sm:$0xff]
    %22 = vrot.lane.b32.xlu0 %v21, 1
    %v23 = vpop.permute.xlu0 %22
    %24 = vst [vmem:[#allocation5] sm:$0xff] %v23
    // Predicated region
    $region10: #{tpu_custom_call.1} parent=1 // pred_check
      _
    $region11: #{tpu_custom_call.1} parent=1 // pred_check_branch
      %26 = sbr.rel (0) target = $region13
    $region12: #{tpu_custom_call.1} parent=1 // pred_region
      %s28 = ssub.s32 128, 128
      %29 = vsyncadd [#allocation4], %s28
      %s31 = sshll.u32 [#allocation5], 4
      %s32 = int_to_ptr.vmem [resolvable:$true] %s31
      %34 = dma.vmem_to_hbm [thread:$0]  %s32, 128, %s1, [#allocation4]
    $region13: #{tpu_custom_call.1} parent=1 // pred_fallthru
      _
    // Predicated region
    $region14: #{tpu_custom_call.1} parent=1 // pred_check
      _
    $region15: #{tpu_custom_call.1} parent=1 // pred_check_branch
      %36 = sbr.rel (0) target = $region17
    $region16: #{tpu_custom_call.1} parent=1 // pred_region
      %37 = dma.done [#allocation4], 128
    $region17: #{tpu_custom_call.1} parent=1 // pred_fallthru
      _
    %38 = vsyncpa [#allocation3], 1
    %39 = vsyncpa [#allocation4], 1

</llo_original>
